<compile_context>
chip_gen: v5e
topology: v5e:2x2
jax: 0.10.0
libtpu: 0.0.40
codegen_flags: <defaults>
</compile_context>

<pallas_src>
import functools

import jax
import jax.numpy as jnp
from jax import lax
from jax.experimental import pallas as pl
from jax.experimental.pallas import tpu as pltpu

_MiB = 1024 * 1024


def _ceil_to(n, m):
    return -(-n // m) * m


def _largest_divisor(n, cap):
    cap = max(1, min(n, int(cap)))
    for d in range(cap, 0, -1):
        if n % d == 0:
            return d
    return 1


def _sublane_multiple(dtype):
    # Native sublane packing: 8 rows of 32-bit; sub-32-bit dtypes pack 2x/4x rows.
    return 8 * max(1, 4 // jnp.dtype(dtype).itemsize)


def _vmem_budget_and_cap():
    """Generation-gated single-pass budget + vmem_limit cap."""
    cap_bytes = 64 * _MiB                      # conservative default (v7x-sized)
    try:
        info = pltpu.get_tpu_info()
        cap_bytes = int(getattr(info, "vmem_capacity_bytes", cap_bytes))
    except Exception:
        pass
    budget = max(16 * _MiB, int(0.70 * cap_bytes))      # ~45 MiB v7x / ~90 MiB v5e,v6e
    limit_cap = max(24 * _MiB, cap_bytes - 12 * _MiB)   # leave compiler headroom
    return budget, limit_cap


def _compiler_params(semantics, est_bytes, limit_cap):
    limit = int(min(limit_cap, max(16 * _MiB, int(est_bytes) + 8 * _MiB)))
    return pltpu.CompilerParams(dimension_semantics=semantics,
                                vmem_limit_bytes=limit)


# ------------------------------ in-kernel epilogue ------------------------------

def _fold_and_scale(ssq, gamma_lanes, eps, fold_groups, num_channels, lanes):
    """ssq: (b, 1, L) f32 per-lane sum-of-squares, lane l holds channel l % C.

    Returns (b, 1, L) f32 scale = 1 + gamma * nx (replicated across lane groups).
    """
    tot = ssq
    if fold_groups > 1:
        # Log-doubling fold over the 128/C lane copies of each channel (XLU rolls
        # on one vreg; free next to the HBM-bound streaming work).
        shift = num_channels
        while shift < lanes:
            tot = tot + pltpu.roll(tot, shift=shift, axis=2)
            shift *= 2
    gx = jnp.sqrt(tot)                                   # per-channel ||x||_2
    mean_c = jnp.mean(gx, axis=2, keepdims=True)         # == mean over channels
    nx = gx / (mean_c + eps)
    return gamma_lanes * nx + 1.0


# ------------------------------ single-pass kernel ------------------------------

def _grn_single_kernel(x_ref, gamma_ref, beta_ref, o_ref, *,
                       eps, fold_groups, num_channels, lanes):
    x32 = x_ref[...].astype(jnp.float32)                 # (b, R, L)
    ssq = jnp.sum(x32 * x32, axis=1, keepdims=True)      # (b, 1, L)
    scale = _fold_and_scale(ssq, gamma_ref[...], eps, fold_groups,
                            num_channels, lanes)
    # f32 math, single cast at the store.
    o_ref[...] = (x32 * scale + beta_ref[...]).astype(o_ref.dtype)


# ------------------------------ two-pass kernels --------------------------------

def _grn_ssq_kernel(x_ref, ssq_ref, *, rows_total, rows_tile, mask_rows):
    """Pass 1: accumulate per-lane sum-of-squares over row tiles (cdiv grid)."""
    t = pl.program_id(1)

    @pl.when(t == 0)
    def _():
        ssq_ref[...] = jnp.zeros_like(ssq_ref)

    x32 = x_ref[...].astype(jnp.float32)                 # (1, rows_tile, L)
    if mask_rows:
        row = lax.broadcasted_iota(jnp.int32, x32.shape, 1) + t * rows_tile
        x32 = jnp.where(row < rows_total, x32, 0.0)
    ssq_ref[...] += jnp.sum(x32 * x32, axis=1, keepdims=True)


def _grn_apply_kernel(x_ref, ssq_ref, gamma_ref, beta_ref, o_ref, *,
                      eps, fold_groups, num_channels, lanes):
    """Pass 2: fused epilogue (scale from ssq) + out = x * scale + beta."""
    scale = _fold_and_scale(ssq_ref[...], gamma_ref[...], eps, fold_groups,
                            num_channels, lanes)
    x32 = x_ref[...].astype(jnp.float32)
    o_ref[...] = (x32 * scale + beta_ref[...]).astype(o_ref.dtype)


# ------------------------------------ wrapper -----------------------------------

def grn_pallas(x, gamma, beta, eps: float = 1e-6, *, block_budget_bytes=None):
    """GRN forward.  x: (N, H, W, C) NHWC; gamma/beta: any shape with C elements."""
    N, H, W, C = x.shape
    HW = H * W
    dtype = x.dtype
    itemsize = jnp.dtype(dtype).itemsize
    sub_mult = _sublane_multiple(dtype)

    budget, limit_cap = _vmem_budget_and_cap()
    if block_budget_bytes is not None:
        budget = int(block_budget_bytes)

    gamma32 = jnp.asarray(gamma, jnp.float32).reshape(-1)
    beta32 = jnp.asarray(beta, jnp.float32).reshape(-1)

    # ---- Lane-dense layout selection: free reshapes only, never transposes. ----
    if C % 128 == 0:
        fold_groups, R, L = 1, HW, C                       # channels on lanes
    elif 128 % C == 0 and (HW * C) % 128 == 0:
        fold_groups, R, L = 128 // C, (HW * C) // 128, 128  # lane-folded NHWC slab
    else:
        # TODO(synk): general C (e.g. 96/192) keeps C on lanes (masked stores); an
        # lcm(C,128)-lane folded layout would make the stores fully lane-dense.
        fold_groups, R, L = 1, HW, C

    x_in = x.reshape(N, R, L)
    if fold_groups > 1:
        g_lanes = jnp.tile(gamma32, fold_groups).reshape(1, 1, L)
        b_lanes = jnp.tile(beta32, fold_groups).reshape(1, 1, L)
    else:
        g_lanes = gamma32.reshape(1, 1, L)
        b_lanes = beta32.reshape(1, 1, L)

    lanes_pad = _ceil_to(L, 128)
    rows_pad = _ceil_to(R, sub_mult)
    # 2x double-buffered in + 2x out (native dtype) + f32 temporaries.
    per_batch_bytes = rows_pad * lanes_pad * (4 * itemsize + 8)

    out_flat_shape = jax.ShapeDtypeStruct((N, R, L), dtype)
    scale_kwargs = dict(eps=eps, fold_groups=fold_groups, num_channels=C, lanes=L)

    if per_batch_bytes <= budget:
        # ---------------- single pass: read x once, write out once ----------------
        # Keep blocks modest (DMA pipelining) and >= min(N, 4) grid steps; only
        # batch several images per block when slabs are tiny.
        # TODO(synk): for N == 1 on v7x the single grid step leaves one TC idle.
        b_tile = 1
        if N > 1 and 2 * per_batch_bytes <= 8 * _MiB:
            cap = min((8 * _MiB) // per_batch_bytes, max(1, N // min(N, 4)))
            b_tile = _largest_divisor(N, cap)

        out = pl.pallas_call(
            functools.partial(_grn_single_kernel, **scale_kwargs),
            out_shape=out_flat_shape,
            grid_spec=pltpu.PrefetchScalarGridSpec(
                num_scalar_prefetch=0,
                grid=(N // b_tile,),
                in_specs=[
                    pl.BlockSpec((b_tile, R, L), lambda i: (i, 0, 0)),
                    pl.BlockSpec((1, 1, L), lambda i: (0, 0, 0)),
                    pl.BlockSpec((1, 1, L), lambda i: (0, 0, 0)),
                ],
                out_specs=pl.BlockSpec((b_tile, R, L), lambda i: (i, 0, 0)),
            ),
            compiler_params=_compiler_params(("parallel",),
                                             b_tile * per_batch_bytes, limit_cap),
            cost_estimate=pl.CostEstimate(
                flops=int(4 * N * R * L),
                transcendentals=int(N * L),
                bytes_accessed=int(2 * N * R * L * itemsize + 8 * L)),
        )(x_in, g_lanes, b_lanes)
        return out.reshape(N, H, W, C)

    # -------- two-pass fallback: row-tiled (cdiv grid + masked remainder) --------
    bytes_per_row_1 = lanes_pad * (2 * itemsize + 8)       # in (x2) + f32 temps
    bytes_per_row_2 = lanes_pad * (4 * itemsize + 8)       # in + out (x2) + f32
    tile_target = min(max(budget, sub_mult * bytes_per_row_2), 8 * _MiB)

    def _row_tile(bytes_per_row):
        cap = max(sub_mult, (tile_target // bytes_per_row) // sub_mult * sub_mult)
        return R if cap >= R else cap

    rows_tile1 = _row_tile(bytes_per_row_1)
    rows_tile2 = _row_tile(bytes_per_row_2)
    n1 = pl.cdiv(R, rows_tile1)
    n2 = pl.cdiv(R, rows_tile2)
    mask_rows = (R % rows_tile1) != 0

    ssq = pl.pallas_call(
        functools.partial(_grn_ssq_kernel, rows_total=R, rows_tile=rows_tile1,
                          mask_rows=mask_rows),
        out_shape=jax.ShapeDtypeStruct((N, 1, L), jnp.float32),
        grid_spec=pltpu.PrefetchScalarGridSpec(
            num_scalar_prefetch=0,
            grid=(N, n1),
            in_specs=[pl.BlockSpec((1, rows_tile1, L), lambda b, t: (b, t, 0))],
            out_specs=pl.BlockSpec((1, 1, L), lambda b, t: (b, 0, 0)),
        ),
        compiler_params=_compiler_params(
            ("parallel", "arbitrary"),
            rows_tile1 * bytes_per_row_1 + 8 * lanes_pad, limit_cap),
        cost_estimate=pl.CostEstimate(
            flops=int(2 * N * R * L),
            transcendentals=0,
            bytes_accessed=int(N * R * L * itemsize + 4 * N * L)),
    )(x_in)

    out = pl.pallas_call(
        functools.partial(_grn_apply_kernel, **scale_kwargs),
        out_shape=out_flat_shape,
        grid_spec=pltpu.PrefetchScalarGridSpec(
            num_scalar_prefetch=0,
            grid=(N, n2),
            in_specs=[
                pl.BlockSpec((1, rows_tile2, L), lambda b, t: (b, t, 0)),
                pl.BlockSpec((1, 1, L), lambda b, t: (b, 0, 0)),
                pl.BlockSpec((1, 1, L), lambda b, t: (0, 0, 0)),
                pl.BlockSpec((1, 1, L), lambda b, t: (0, 0, 0)),
            ],
            out_specs=pl.BlockSpec((1, rows_tile2, L), lambda b, t: (b, t, 0)),
        ),
        compiler_params=_compiler_params(
            ("parallel", "parallel"),
            rows_tile2 * bytes_per_row_2 + 16 * lanes_pad, limit_cap),
        cost_estimate=pl.CostEstimate(
            flops=int(2 * N * R * L),
            transcendentals=int(N * L),
            bytes_accessed=int(2 * N * R * L * itemsize + 4 * N * L + 8 * L)),
    )(x_in, ssq, g_lanes, b_lanes)
    return out.reshape(N, H, W, C)


def grn_reference(x, gamma, beta, eps: float = 1e-6):
    """Pure-JAX reference mirroring the PyTorch forward (NHWC)."""
    xf = x.astype(jnp.float32)
    gx = jnp.sqrt(jnp.sum(xf * xf, axis=(1, 2), keepdims=True))      # (N,1,1,C)
    nx = gx / (jnp.mean(gx, axis=-1, keepdims=True) + eps)           # (N,1,1,C)
    g = jnp.asarray(gamma, jnp.float32).reshape(1, 1, 1, -1)
    b = jnp.asarray(beta, jnp.float32).reshape(1, 1, 1, -1)
    return (g * (xf * nx) + b + xf).astype(x.dtype)


if __name__ == "__main__":
    key = jax.random.PRNGKey(0)
    k1, k2, k3, kg, kb = jax.random.split(key, 5)

    # Case 1: lane-folded single pass (C=4 divides 128) — no transposes.
    N, H, W, C = 2, 16, 16, 4
    x = jax.random.normal(k1, (N, H, W, C), dtype=jnp.float32)
    gamma = 0.1 * jax.random.normal(kg, (C,), dtype=jnp.float32)
    beta = 0.1 * jax.random.normal(kb, (C,), dtype=jnp.float32)
    out = jax.block_until_ready(grn_pallas(x, gamma, beta))
    ref = grn_reference(x, gamma, beta)
    assert out.shape == x.shape and out.dtype == x.dtype
    assert jnp.allclose(out, ref, atol=1e-5, rtol=1e-5), "case1 (lane-fold) mismatch"

    # Case 2: channels-on-lanes single pass (C=128).
    x2 = jax.random.normal(k2, (2, 8, 8, 128), dtype=jnp.float32)
    g2 = 0.1 * jnp.arange(128, dtype=jnp.float32) / 128.0
    b2 = -0.05 + 0.1 * jnp.arange(128, dtype=jnp.float32) / 128.0
    ref2 = grn_reference(x2, g2, b2)
    out2 = jax.block_until_ready(grn_pallas(x2, g2, b2))
    assert jnp.allclose(out2, ref2, atol=1e-5, rtol=1e-5), "case2 mismatch"

    # Case 3: force the two-pass (row-tiled) fallback on the same data.
    out3 = jax.block_until_ready(grn_pallas(x2, g2, b2, block_budget_bytes=4096))
    assert jnp.allclose(out3, ref2, atol=1e-5, rtol=1e-5), "case3 (two-pass) mismatch"

    # Case 4: general C (96) + ragged HW (81) -> two-pass, cdiv grid, masked rows.
    x4 = jax.random.normal(k3, (2, 9, 9, 96), dtype=jnp.float32)
    g4 = 0.05 * jnp.cos(jnp.arange(96, dtype=jnp.float32))
    b4 = 0.05 * jnp.sin(jnp.arange(96, dtype=jnp.float32))
    ref4 = grn_reference(x4, g4, b4)
    out4 = jax.block_until_ready(grn_pallas(x4, g4, b4, block_budget_bytes=4096))
    assert jnp.allclose(out4, ref4, atol=1e-5, rtol=1e-5), "case4 (ragged) mismatch"

    # Case 5: bf16 input — f32 epilogue with a single cast at the store.
    xb = jax.random.normal(k1, (2, 16, 16, 4), dtype=jnp.float32).astype(jnp.bfloat16)
    refb = grn_reference(xb, gamma, beta)
    outb = jax.block_until_ready(grn_pallas(xb, gamma, beta))
    assert outb.dtype == jnp.bfloat16
    assert jnp.allclose(outb.astype(jnp.float32), refb.astype(jnp.float32),
                        atol=3e-2, rtol=3e-2), "case5 (bf16) mismatch"

    print("KERNEL_OK")
</pallas_src>

<mosaic_0001>
module attributes {stable_mosaic.version = 11 : i64} {
  func.func @_grn_single_kernel(%arg0: i32, %arg1: memref<1x8x128xf32, #tpu.memory_space<vmem>>, %arg2: memref<1x1x128xf32, #tpu.memory_space<vmem>>, %arg3: memref<1x1x128xf32, #tpu.memory_space<vmem>>, %arg4: memref<1x8x128xf32, #tpu.memory_space<vmem>>) attributes {dimension_semantics = [#tpu.dimension_semantics<parallel>], iteration_bounds = array<i64: 2>, scalar_prefetch = 0 : i64, scratch_operands = 0 : i64, tpu.core_type = #tpu.core_type<tc>, window_params = [{transform_indices = @transform_0, window_bounds = array<i64: 1, 8, 128>}, {pipeline_mode = #tpu.pipeline_mode<synchronous>, transform_indices = @transform_1, window_bounds = array<i64: 1, 1, 128>}, {pipeline_mode = #tpu.pipeline_mode<synchronous>, transform_indices = @transform_2, window_bounds = array<i64: 1, 1, 128>}, {transform_indices = @transform_3, window_bounds = array<i64: 1, 8, 128>}]} {
    %c0 = arith.constant 0 : index
    %c0_0 = arith.constant 0 : index
    %c0_1 = arith.constant 0 : index
    %0 = vector.load %arg1[%c0, %c0_0, %c0_1] : memref<1x8x128xf32, #tpu.memory_space<vmem>>, vector<1x8x128xf32>
    %1 = arith.mulf %0, %0 : vector<1x8x128xf32>
    %cst = arith.constant dense<0.000000e+00> : vector<1x128xf32>
    %2 = vector.multi_reduction <add>, %1, %cst [1] : vector<1x8x128xf32> to vector<1x128xf32>
    %3 = vector.shape_cast %2 : vector<1x128xf32> to vector<1x1x128xf32>
    %c0_2 = arith.constant 0 : index
    %c0_3 = arith.constant 0 : index
    %c0_4 = arith.constant 0 : index
    %4 = vector.load %arg2[%c0_2, %c0_3, %c0_4] : memref<1x1x128xf32, #tpu.memory_space<vmem>>, vector<1x1x128xf32>
    %c4_i32 = arith.constant 4 : i32
    %5 = tpu.dynamic_rotate %3 by %c4_i32 dim 2 : vector<1x1x128xf32>, i32 -> vector<1x1x128xf32>
    %6 = arith.addf %3, %5 : vector<1x1x128xf32>
    %c8_i32 = arith.constant 8 : i32
    %7 = tpu.dynamic_rotate %6 by %c8_i32 dim 2 : vector<1x1x128xf32>, i32 -> vector<1x1x128xf32>
    %8 = arith.addf %6, %7 : vector<1x1x128xf32>
    %c16_i32 = arith.constant 16 : i32
    %9 = tpu.dynamic_rotate %8 by %c16_i32 dim 2 : vector<1x1x128xf32>, i32 -> vector<1x1x128xf32>
    %10 = arith.addf %8, %9 : vector<1x1x128xf32>
    %c32_i32 = arith.constant 32 : i32
    %11 = tpu.dynamic_rotate %10 by %c32_i32 dim 2 : vector<1x1x128xf32>, i32 -> vector<1x1x128xf32>
    %12 = arith.addf %10, %11 : vector<1x1x128xf32>
    %c64_i32 = arith.constant 64 : i32
    %13 = tpu.dynamic_rotate %12 by %c64_i32 dim 2 : vector<1x1x128xf32>, i32 -> vector<1x1x128xf32>
    %14 = arith.addf %12, %13 : vector<1x1x128xf32>
    %15 = math.sqrt %14 : vector<1x1x128xf32>
    %cst_5 = arith.constant dense<0.000000e+00> : vector<1x1xf32>
    %16 = vector.multi_reduction <add>, %15, %cst_5 [2] : vector<1x1x128xf32> to vector<1x1xf32>
    %17 = vector.shape_cast %16 : vector<1x1xf32> to vector<1x1x1xf32>
    %cst_6 = arith.constant 1.280000e+02 : f32
    %18 = vector.broadcast %cst_6 : f32 to vector<1x1x1xf32>
    %19 = arith.divf %17, %18 : vector<1x1x1xf32>
    %cst_7 = arith.constant 9.99999997E-7 : f32
    %20 = vector.broadcast %cst_7 : f32 to vector<1x1x1xf32>
    %21 = arith.addf %19, %20 : vector<1x1x1xf32>
    %22 = vector.broadcast %21 : vector<1x1x1xf32> to vector<1x1x128xf32>
    %23 = arith.divf %15, %22 : vector<1x1x128xf32>
    %24 = arith.mulf %4, %23 : vector<1x1x128xf32>
    %cst_8 = arith.constant 1.000000e+00 : f32
    %25 = vector.broadcast %cst_8 : f32 to vector<1x1x128xf32>
    %26 = arith.addf %24, %25 : vector<1x1x128xf32>
    %27 = vector.broadcast %26 : vector<1x1x128xf32> to vector<1x8x128xf32>
    %28 = arith.mulf %0, %27 : vector<1x8x128xf32>
    %c0_9 = arith.constant 0 : index
    %c0_10 = arith.constant 0 : index
    %c0_11 = arith.constant 0 : index
    %29 = vector.load %arg3[%c0_9, %c0_10, %c0_11] : memref<1x1x128xf32, #tpu.memory_space<vmem>>, vector<1x1x128xf32>
    %30 = vector.broadcast %29 : vector<1x1x128xf32> to vector<1x8x128xf32>
    %31 = arith.addf %28, %30 : vector<1x8x128xf32>
    %c0_12 = arith.constant 0 : index
    %c0_13 = arith.constant 0 : index
    %c0_14 = arith.constant 0 : index
    %32 = vector.load %arg4[%c0_12, %c0_13, %c0_14] : memref<1x8x128xf32, #tpu.memory_space<vmem>>, vector<1x8x128xf32>
    tpu.vector_store %arg4[%c0_12, %c0_13, %c0_14], %31 {strides = array<i32>} : memref<1x8x128xf32, #tpu.memory_space<vmem>>, vector<1x8x128xf32>,
    return
  }
  func.func @transform_0(%arg0: i32) -> (i32, i32, i32) {
    %c0_i32 = arith.constant 0 : i32
    %c0_i32_0 = arith.constant 0 : i32
    %c0_i32_1 = arith.constant 0 : i32
    return %arg0, %c0_i32, %c0_i32_0 : i32, i32, i32
  }
  func.func @transform_1(%arg0: i32) -> (i32, i32, i32) {
    %c0_i32 = arith.constant 0 : i32
    %c0_i32_0 = arith.constant 0 : i32
    %c0_i32_1 = arith.constant 0 : i32
    %c0_i32_2 = arith.constant 0 : i32
    return %c0_i32, %c0_i32_0, %c0_i32_1 : i32, i32, i32
  }
  func.func @transform_2(%arg0: i32) -> (i32, i32, i32) {
    %c0_i32 = arith.constant 0 : i32
    %c0_i32_0 = arith.constant 0 : i32
    %c0_i32_1 = arith.constant 0 : i32
    %c0_i32_2 = arith.constant 0 : i32
    return %c0_i32, %c0_i32_0, %c0_i32_1 : i32, i32, i32
  }
  func.func @transform_3(%arg0: i32) -> (i32, i32, i32) {
    %c0_i32 = arith.constant 0 : i32
    %c0_i32_0 = arith.constant 0 : i32
    %c0_i32_1 = arith.constant 0 : i32
    return %arg0, %c0_i32, %c0_i32_0 : i32, i32, i32
  }
}

</mosaic_0001>

<llo_original>
// kernel: tpu_custom_call.1
$region0: #{tpu_custom_call.1}
  #allocation0 [shape = 'u32[]', space=smem, size = 0x4, offset = 0x4, fixed_abs, tag = 'smem constant byte address 0x4 - core index']
  #allocation1 [shape = 'u32[72,128]{1,0:T(1,128)}', space=vmem, size = 0x9000, scoped, tag = 'internal scratch']
  %s0 = inlined_call_operand.hbm [shape: f32[2,8,128], index: 0, kind: input, shape index: {}]
  %s1 = inlined_call_operand.hbm [shape: f32[1,1,128], index: 1, kind: input, shape index: {}]
  %s2 = inlined_call_operand.vmem [shape: f32[1,1,128], index: 2, kind: input, shape index: {}]
  %s3 = inlined_call_operand.hbm [shape: f32[2,8,128], index: 3, kind: output, shape index: {}]
  %s4 = sld [smem:[#allocation0]]
  $region53: #{tpu_custom_call.1} parent=0
    _
  %s6 = ssub.s32 1, %s4
  %s7 = scalar_select 0, %s6, %s4
  $region1: #{tpu_custom_call.1} parent=0
    #allocation2 [shape = 'u8[8192]{0}', space=vmem, size = 0x2000, scoped, tag = 'input window, operand 0']
    #allocation3 [shape = 's32[2]{0}', space=sflag, size = 0x8, scoped, tag = 'scoped memory for tpu_custom_call.1']
    #allocation4 [shape = 's32[2]{0}', space=sflag, size = 0x8, scoped, tag = 'scoped memory for tpu_custom_call.1']
    #allocation5 [shape = 'u8[512]{0}', space=vmem, size = 0x400, scoped, tag = 'input window, operand 1, single buffered']
    #allocation6 [shape = 's32[1]{0}', space=sflag, size = 0x4, scoped, tag = 'scoped memory for tpu_custom_call.1']
    #allocation7 [shape = 'u8[8192]{0}', space=vmem, size = 0x2000, scoped, tag = 'output window, operand 0']
    %8 = vsyncpa [#allocation3], 0
    %s9 = scalar_lea.sflag [#allocation3], 1
    %10 = vsyncpa %s9, 0
    %11 = vsyncpa [#allocation6], 0
    %12 = vsyncpa [#allocation4], 0
    %s13 = scalar_lea.sflag [#allocation4], 1
    %14 = vsyncpa %s13, 0
    loop: start=0, step=1, limit=4
    $region2: #{tpu_custom_call.1} parent=1 // loop_pre_header
      _
    $region3: #{tpu_custom_call.1} parent=1 // loop_header
      %s16 = sphi 0, %s20
      %p17 = scmp.ge.s32.totalorder %s16, 4
      %s26 = sphi 0, %s28
      %s29 = sphi 0, %s26
      %s30 = sphi 0, %s29
      %s46 = sphi 0, %s30
      %s50 = sphi 0, %s50
      %s52 = sphi 0, %s50
      %s53 = sphi 0, %s52
      %s67 = sphi 0, %s53
      %s71 = sphi 0, %s71
      %s73 = sphi 0, %s71
      %s74 = sphi 0, %s73
      %s88 = sphi 0, %s74
      %s94 = sphi 0, %s96
      %s97 = sphi 0, %s94
      %s98 = sphi 0, %s97
      %s114 = sphi 0, %s98
    $region4: #{tpu_custom_call.1} parent=1 // loop_header_branch
      %19 = sbr.rel (%p17) target = $region8
    $region5: #{tpu_custom_call.1} parent=1 // loop_body
      %s21 = ssub.s32 %s16, 1
      %s22 = ssub.s32 %s16, 2
      %s23 = sadd.s32 %s16, 1
      %s24 = ssub.s32 %s16, %s23
      %p25 = scmp.eq.s32.totalorder %s24, 0
      %s27 = sadd.s32 %s26, 1
      %s28 = scalar_select %p25, %s26, %s27
      %p31 = pneg %p25
      %p32 = scmp.eq.s32.totalorder %s16, 1
      %p33 = por %p31, %p32
      %p34 = scmp.ne.s32.totalorder %s26, %s29
      %p35 = scmp.eq.s32.totalorder %s16, 0
      %p36 = por %p34, %p35
      %p37 = scmp.ne.s32.totalorder %s26, %s29
      %p38 = scmp.eq.s32.totalorder %s21, 1
      %p39 = por %p37, %p38
      %p40 = scmp.ne.s32.totalorder %s29, %s30
      %p41 = scmp.eq.s32.totalorder %s21, 0
      %p42 = por %p40, %p41
      %p43 = scmp.ne.s32.totalorder %s29, %s30
      %p44 = scmp.eq.s32.totalorder %s22, 1
      %p45 = por %p43, %p44
      %p47 = scmp.ne.s32.totalorder %s30, %s46
      %p48 = scmp.eq.s32.totalorder %s22, 0
      %p49 = por %p47, %p48
      %s51 = sadd.s32 %s50, 1
      %p54 = scmp.eq.s32.totalorder %s16, 1
      %p55 = scmp.ne.s32.totalorder %s50, %s52
      %p56 = scmp.eq.s32.totalorder %s16, 0
      %p57 = por %p55, %p56
      %p58 = scmp.ne.s32.totalorder %s50, %s52
      %p59 = scmp.eq.s32.totalorder %s21, 1
      %p60 = por %p58, %p59
      %p61 = scmp.ne.s32.totalorder %s52, %s53
      %p62 = scmp.eq.s32.totalorder %s21, 0
      %p63 = por %p61, %p62
      %p64 = scmp.ne.s32.totalorder %s52, %s53
      %p65 = scmp.eq.s32.totalorder %s22, 1
      %p66 = por %p64, %p65
      %p68 = scmp.ne.s32.totalorder %s53, %s67
      %p69 = scmp.eq.s32.totalorder %s22, 0
      %p70 = por %p68, %p69
      %s72 = sadd.s32 %s71, 1
      %p75 = scmp.eq.s32.totalorder %s16, 1
      %p76 = scmp.ne.s32.totalorder %s71, %s73
      %p77 = scmp.eq.s32.totalorder %s16, 0
      %p78 = por %p76, %p77
      %p79 = scmp.ne.s32.totalorder %s71, %s73
      %p80 = scmp.eq.s32.totalorder %s21, 1
      %p81 = por %p79, %p80
      %p82 = scmp.ne.s32.totalorder %s73, %s74
      %p83 = scmp.eq.s32.totalorder %s21, 0
      %p84 = por %p82, %p83
      %p85 = scmp.ne.s32.totalorder %s73, %s74
      %p86 = scmp.eq.s32.totalorder %s22, 1
      %p87 = por %p85, %p86
      %p89 = scmp.ne.s32.totalorder %s74, %s88
      %p90 = scmp.eq.s32.totalorder %s22, 0
      %p91 = por %p89, %p90
      %s92 = ssub.s32 %s16, %s23
      %p93 = scmp.eq.s32.totalorder %s92, 0
      %s95 = sadd.s32 %s94, 1
      %s96 = scalar_select %p93, %s94, %s95
      %p99 = pneg %p93
      %p100 = scmp.eq.s32.totalorder %s16, 1
      %p101 = por %p99, %p100
      %p102 = scmp.ne.s32.totalorder %s94, %s97
      %p103 = scmp.eq.s32.totalorder %s16, 0
      %p104 = por %p102, %p103
      %p105 = scmp.ne.s32.totalorder %s94, %s97
      %p106 = scmp.eq.s32.totalorder %s21, 1
      %p107 = por %p105, %p106
      %p108 = scmp.ne.s32.totalorder %s97, %s98
      %p109 = scmp.eq.s32.totalorder %s21, 0
      %p110 = por %p108, %p109
      %p111 = scmp.ne.s32.totalorder %s97, %s98
      %p112 = scmp.eq.s32.totalorder %s22, 1
      %p113 = por %p111, %p112
      %p115 = scmp.ne.s32.totalorder %s98, %s114
      %p116 = scmp.eq.s32.totalorder %s22, 0
      %p117 = por %p115, %p116
      %p118 = scmp.le.s32.totalorder 1, %s16
      %p119 = scmp.lt.s32.totalorder %s16, 3
      %p120 = pnand %p118, %p119
      %p121 = pneg %p120
      // Predicated region
      $region9: #{tpu_custom_call.1} parent=5 // pred_check
        _
      $region10: #{tpu_custom_call.1} parent=5 // pred_check_branch
        %123 = sbr.rel (%p120) target = $region12
      $region11: #{tpu_custom_call.1} parent=5 // pred_region
        %s124 = ssub.s32 %s16, 1
        // Predicated region
        $region13: #{tpu_custom_call.1} parent=11 // pred_check
          %p125 = pneg %p63
        $region14: #{tpu_custom_call.1} parent=11 // pred_check_branch
          %127 = sbr.rel (%p125) target = $region16
        $region15: #{tpu_custom_call.1} parent=11 // pred_region
          %129 = vsyncadd [#allocation6], 0
          %s131 = sshll.u32 %s1, 4
          %s132 = int_to_ptr.hbm [resolvable:$true] %s131
          %s133 = sshll.u32 [#allocation5], 4
          %s134 = int_to_ptr.vmem [resolvable:$true] %s133
          %136 = dma.hbm_to_vmem [thread:$0]  %s132, 16, %s134, [#allocation6]
        $region16: #{tpu_custom_call.1} parent=11 // pred_fallthru
          _
        // Predicated region
        $region17: #{tpu_custom_call.1} parent=11 // pred_check
          %p137 = pneg %p84
        $region18: #{tpu_custom_call.1} parent=11 // pred_check_branch
          %139 = sbr.rel (%p137) target = $region20
        $region19: #{tpu_custom_call.1} parent=11 // pred_region
          _
        $region20: #{tpu_custom_call.1} parent=11 // pred_fallthru
          _
      $region12: #{tpu_custom_call.1} parent=5 // pred_fallthru
        _
      %p140 = scmp.lt.s32.totalorder %s16, 2
      // Predicated region
      $region21: #{tpu_custom_call.1} parent=5 // pred_check
        %p141 = pneg %p140
      $region22: #{tpu_custom_call.1} parent=5 // pred_check_branch
        %143 = sbr.rel (%p141) target = $region24
      $region23: #{tpu_custom_call.1} parent=5 // pred_region
        // Predicated region
        $region25: #{tpu_custom_call.1} parent=23 // pred_check
          %p144 = pneg %p36
        $region26: #{tpu_custom_call.1} parent=23 // pred_check_branch
          %146 = sbr.rel (%p144) target = $region28
        $region27: #{tpu_custom_call.1} parent=23 // pred_region
          %s147 = sand.u32 %s26, 1
          %s148 = scalar_lea.sflag [#allocation3], %s147
          %s149 = sand.u32 %s26, 1
          %s150 = smul.addr %s149, 8
          %s151 = scalar_lea.vmem [#allocation2], %s150
          %153 = vsyncadd %s148, 0
          %s154 = smul.addr %s16, 8
          %s155 = scalar_lea.hbm %s0, %s154
          %s157 = sshll.u32 %s155, 4
          %s158 = int_to_ptr.hbm [resolvable:$true] %s157
          %s159 = sshll.u32 %s151, 4
          %s160 = int_to_ptr.vmem [resolvable:$true] %s159
          %162 = dma.hbm_to_vmem [thread:$0]  %s158, 128, %s160, %s148
        $region28: #{tpu_custom_call.1} parent=23 // pred_fallthru
          _
      $region24: #{tpu_custom_call.1} parent=5 // pred_fallthru
        _
      %p163 = scmp.le.s32.totalorder 1, %s16
      %p164 = scmp.lt.s32.totalorder %s16, 3
      %p165 = pnand %p163, %p164
      %p166 = pneg %p165
      // Predicated region
      $region29: #{tpu_custom_call.1} parent=5 // pred_check
        _
      $region30: #{tpu_custom_call.1} parent=5 // pred_check_branch
        %168 = sbr.rel (%p165) target = $region32
      $region31: #{tpu_custom_call.1} parent=5 // pred_region
        %s169 = ssub.s32 %s16, 1
        %s170 = sand.u32 %s29, 1
        %s171 = scalar_lea.sflag [#allocation3], %s170
        %s172 = sand.u32 %s29, 1
        %s173 = smul.addr %s172, 8
        %s174 = scalar_lea.vmem [#allocation2], %s173
        // Predicated region
        $region33: #{tpu_custom_call.1} parent=31 // pred_check
          %p175 = pneg %p42
        $region34: #{tpu_custom_call.1} parent=31 // pred_check_branch
          %177 = sbr.rel (%p175) target = $region36
        $region35: #{tpu_custom_call.1} parent=31 // pred_region
          %179 = dma.done %s171, 128
        $region36: #{tpu_custom_call.1} parent=31 // pred_fallthru
          _
        // Predicated region
        $region37: #{tpu_custom_call.1} parent=31 // pred_check
          %p180 = pneg %p63
        $region38: #{tpu_custom_call.1} parent=31 // pred_check_branch
          %182 = sbr.rel (%p180) target = $region40
        $region39: #{tpu_custom_call.1} parent=31 // pred_region
          %184 = dma.done [#allocation6], 16
        $region40: #{tpu_custom_call.1} parent=31 // pred_fallthru
          _
        %s185 = sand.u32 %s29, 1
        %s186 = scalar_lea.sflag [#allocation3], %s185
        %s187 = sand.u32 %s29, 1
        %s188 = smul.addr %s187, 8
        %s189 = scalar_lea.vmem [#allocation2], %s188
        %p190 = pneg %p42
        %p191 = pneg %p39
        %p192 = pneg %p63
        %p193 = pneg %p60
        %p194 = pneg %p84
        %p195 = pneg %p81
        %p196 = pneg %p110
        %p197 = pneg %p107
        %s198 = sand.u32 %s97, 1
        %s199 = scalar_lea.sflag [#allocation4], %s198
        %s200 = sand.u32 %s97, 1
        %s201 = smul.addr %s200, 8
        %s202 = scalar_lea.vmem [#allocation7], %s201
        %v203 = vld [vmem:[%s174] sm:$0xff]
        %v204 = vmul.f32 %v203, %v203
        %v205 = vrot.slane %v204, 4
        %v206 = vadd.f32 %v204, %v205
        %v207 = vrot.slane %v206, 2
        %v208 = vadd.f32 %v206, %v207
        %v209 = vrot.slane %v208, 1
        %v210 = vadd.f32 %v208, %v209
        %v211 = vld [vmem:[#allocation5] sm:$0x1]
        %212 = vrot.lane.b32.xlu0 %v210, 4
        %v213 = vpop.permute.xlu0 %212
        %v214 = vadd.f32 %v210, %v213
        %215 = vrot.lane.b32.xlu0 %v214, 8
        %v216 = vpop.permute.xlu0 %215
        %v217 = vadd.f32 %v214, %v216
        %218 = vrot.lane.b32.xlu0 %v217, 16
        %v219 = vpop.permute.xlu0 %218
        %v220 = vadd.f32 %v217, %v219
        %221 = vrot.lane.b32.xlu0 %v220, 32
        %v222 = vpop.permute.xlu0 %221
        %v223 = vadd.f32 %v220, %v222
        %224 = vrot.lane.b32.xlu0 %v223, 64
        %v225 = vpop.permute.xlu0 %224
        %v226 = vadd.f32 %v223, %v225
        %v227 = vrsqrt.pop %v226
        %v228 = vmul.f32 %v227, %v226
        %v229 = vmul.f32 %v228, %v227
        %v230 = vmul.f32 0.5, %v229
        %v231 = vsub.f32 1.5, %v230
        %v232 = vmul.f32 %v227, %v231
        %v233 = vmul.f32 %v226, %v232
        %vm234 = vcmp.eq.f32.partialorder %v226, inf
        %v235 = vsel %vm234, %v226, %v233
        %vm236 = vcmp.eq.f32.partialorder %v226, 0.0
        %v237 = vand.u32 %v226, 2147483648
        %v238 = vsel %vm236, %v237, %v235
        %vm239 = vcmask 1040384
        %v240 = vsel %vm239, %v238, 0.0
        %241 = vadd.xlane.f32.xlu0 %v240
        %v242 = vpop.xlane.xlu0 %241
        %v243 = vrcp.pop 128.0
        %v244 = vmul.f32 128.0, %v243
        %v245 = vsub.f32 1.0, %v244
        %v246 = vmul.f32 %v243, %v245
        %v247 = vadd.f32 %v243, %v246
        %vm248 = vweird.f32 %v243
        %v249 = vsel %vm248, %v243, %v247
        %v250 = vmul.f32 %v242, %v249
        %v251 = vadd.f32 %v250, 1e-06
        %v252 = vrcp.pop %v251
        %v253 = vmul.f32 %v251, %v252
        %v254 = vsub.f32 1.0, %v253
        %v255 = vmul.f32 %v252, %v254
        %v256 = vadd.f32 %v252, %v255
        %vm257 = vweird.f32 %v251
        %vm258 = vweird.f32 %v252
        %vm259 = vmor %vm257, %vm258
        %v260 = vsel %vm259, %v252, %v256
        %v261 = vand.u32 2147483647, %v251
        %vm262 = vcmp.eq.f32.partialorder %v261, 8.507059e+37
        %v263 = vand.u32 %v251, 2147483648
        %v264 = vor.u32 1.1754944e-38, %v263
        %v265 = vsel %vm262, %v264, %v260
        %v266 = vmul.f32 %v238, %v265
        %v267 = vmul.f32 %v211, %v266
        %v268 = vadd.f32 %v267, 1.0
        %v270 = vperm.slane %v268, 0
        %v272 = vmul.f32 %v203, %v270
        %v273 = vld [vmem:[%s2] sm:$0x1]
        %v275 = vperm.slane %v273, 0
        %v277 = vadd.f32 %v272, %v275
        %278 = vst [vmem:[%s202] sm:$0xff] %v277
        %s279 = sand.u32 %s97, 1
        %s280 = scalar_lea.sflag [#allocation4], %s279
        %s281 = sand.u32 %s97, 1
        %s282 = smul.addr %s281, 8
        %s283 = scalar_lea.vmem [#allocation7], %s282
        // Predicated region
        $region41: #{tpu_custom_call.1} parent=31 // pred_check
          %p284 = pneg %p107
        $region42: #{tpu_custom_call.1} parent=31 // pred_check_branch
          %286 = sbr.rel (%p284) target = $region44
        $region43: #{tpu_custom_call.1} parent=31 // pred_region
          %288 = vsyncadd %s280, 0
          %s289 = smul.addr %s21, 8
          %s290 = scalar_lea.hbm %s3, %s289
          %s292 = sshll.u32 %s283, 4
          %s293 = int_to_ptr.vmem [resolvable:$true] %s292
          %s294 = sshll.u32 %s290, 4
          %s295 = int_to_ptr.hbm [resolvable:$true] %s294
          %297 = dma.vmem_to_hbm [thread:$0]  %s293, 128, %s295, %s280
        $region44: #{tpu_custom_call.1} parent=31 // pred_fallthru
          _
      $region32: #{tpu_custom_call.1} parent=5 // pred_fallthru
        _
      %p298 = scmp.le.s32.totalorder 2, %s16
      // Predicated region
      $region45: #{tpu_custom_call.1} parent=5 // pred_check
        %p299 = pneg %p298
      $region46: #{tpu_custom_call.1} parent=5 // pred_check_branch
        %301 = sbr.rel (%p299) target = $region48
      $region47: #{tpu_custom_call.1} parent=5 // pred_region
        %s302 = ssub.s32 %s16, 2
        // Predicated region
        $region49: #{tpu_custom_call.1} parent=47 // pred_check
          %p303 = pneg %p113
        $region50: #{tpu_custom_call.1} parent=47 // pred_check_branch
          %305 = sbr.rel (%p303) target = $region52
        $region51: #{tpu_custom_call.1} parent=47 // pred_region
          %s306 = sand.u32 %s98, 1
          %s307 = scalar_lea.sflag [#allocation4], %s306
          %s308 = sand.u32 %s98, 1
          %s309 = smul.addr %s308, 8
          %s310 = scalar_lea.vmem [#allocation7], %s309
          %312 = dma.done %s307, 128
        $region52: #{tpu_custom_call.1} parent=47 // pred_fallthru
          _
      $region48: #{tpu_custom_call.1} parent=5 // pred_fallthru
        _
    $region6: #{tpu_custom_call.1} parent=1 // loop_footer
      %s20 = sadd.s32 1, %s16
    $region7: #{tpu_custom_call.1} parent=1 // loop_footer_branch
      %15 = sbr.rel target = $region3
    $region8: #{tpu_custom_call.1} parent=1 // loop_exit
      _
    %313 = vsyncpa [#allocation3], 1
    %s314 = scalar_lea.sflag [#allocation3], 1
    %315 = vsyncpa %s314, 1
    %316 = vsyncpa [#allocation6], 1
    %317 = vsyncpa [#allocation4], 1
    %s318 = scalar_lea.sflag [#allocation4], 1
    %319 = vsyncpa %s318, 1

</llo_original>
